<compile_context>
chip_gen: v6e
topology: v6e:2x2x1
jax: 0.10.0
libtpu: 0.0.40
codegen_flags: <defaults>
</compile_context>

<pallas_src>
import functools

import jax
import jax.numpy as jnp
from jax.experimental import pallas as pl
from jax.experimental.pallas import tpu as pltpu

LANE = 128
_NEG_INF = -1e30


def _round_up(n, m):
    return ((n + m - 1) // m) * m


def _masked_log_softmax(logits, num_classes):
    """Numerically stable log_softmax over the first `num_classes` lanes."""
    # Single (1, C_p) iota row; jnp.where broadcasts it over the node rows.
    lane = jax.lax.broadcasted_iota(jnp.int32, (1, logits.shape[-1]), 1)
    masked = jnp.where(lane < num_classes, logits, _NEG_INF)
    m = jnp.max(masked, axis=-1, keepdims=True)
    z = masked - m
    lse = jnp.log(jnp.sum(jnp.exp(z), axis=-1, keepdims=True))
    return z - lse


# ----------------------------------------------------------------------------
# Path 1: fused gridless kernel — everything VMEM-resident.
#   out = log_softmax(A @ (relu((A @ X) @ W1 + b1) @ W2) + b2)
# ----------------------------------------------------------------------------
def _gcn_fused_kernel(a_ref, x_ref, w1_ref, b1_ref, w2_ref, b2_ref, o_ref, *,
                      num_classes):
    bf16 = jnp.bfloat16
    a = a_ref[...]                                             # (N_p, N_p) bf16

    # Layer 1: h = relu((A @ X) @ W1 + b1)   (bf16 MXU inputs, f32 accumulate)
    ax = jnp.dot(a, x_ref[...], preferred_element_type=jnp.float32)
    h = jnp.dot(ax.astype(bf16), w1_ref[...],
                preferred_element_type=jnp.float32) + b1_ref[...]
    h = jnp.maximum(h, 0.0)                                    # f32 epilogue

    # F.dropout(p, training=self.training): inference mode -> identity.
    # TODO(synk): training-mode dropout via pltpu.prng_seed / prng_random_bits.

    # Layer 2: logits = A @ (h @ W2) + b2
    hw = jnp.dot(h.astype(bf16), w2_ref[...],
                 preferred_element_type=jnp.float32)
    logits = jnp.dot(a, hw.astype(bf16),
                     preferred_element_type=jnp.float32) + b2_ref[...]

    o_ref[...] = _masked_log_softmax(logits, num_classes).astype(o_ref.dtype)


# ----------------------------------------------------------------------------
# Path 2: row-tiled streaming kernel (A too big for resident VMEM, e.g. v7x).
# grid = (phase, row_tile).  Phase 0 builds HW = relu((A@X)@W1+b1) @ W2 tile by
# tile into a persistent bf16 VMEM scratch; phase 1 computes A @ HW + b2 and
# the log_softmax epilogue.
# ----------------------------------------------------------------------------
def _gcn_tiled_kernel(a_ref, x_ref, w1_ref, b1_ref, w2_ref, b2_ref, o_ref,
                      hw_ref, *, num_classes, tm):
    bf16 = jnp.bfloat16
    phase = pl.program_id(0)
    i = pl.program_id(1)
    a = a_ref[...]                                             # (TM, N_p) bf16

    @pl.when(phase == 0)
    def _():
        ax = jnp.dot(a, x_ref[...], preferred_element_type=jnp.float32)
        h = jnp.dot(ax.astype(bf16), w1_ref[...],
                    preferred_element_type=jnp.float32) + b1_ref[...]
        h = jnp.maximum(h, 0.0)
        hw = jnp.dot(h.astype(bf16), w2_ref[...],
                     preferred_element_type=jnp.float32)
        row0 = pl.multiple_of(i * tm, tm)
        hw_ref[pl.ds(row0, tm), :] = hw.astype(hw_ref.dtype)

    @pl.when(phase == 1)
    def _():
        logits = jnp.dot(a, hw_ref[...],
                         preferred_element_type=jnp.float32) + b2_ref[...]
        o_ref[...] = _masked_log_softmax(logits, num_classes).astype(o_ref.dtype)


# ----------------------------------------------------------------------------
# Jitted forward (padded/cast static operands are prepared OUTSIDE this fn).
# ----------------------------------------------------------------------------
@functools.partial(jax.jit, static_argnames=("num_classes", "force_tiled"))
def gcn_net_forward(a_pad, x, padded_params, *, num_classes, force_tiled=False):
    n, f = x.shape
    n_p = a_pad.shape[0]
    w1_pad = padded_params["w1"]
    b1_pad = padded_params["b1"]
    w2_pad = padded_params["w2"]
    b2_pad = padded_params["b2"]
    f_p, h_p = w1_pad.shape
    c_p = w2_pad.shape[1]

    # Only X is a per-call input -> pad (and cast to bf16) inside the fwd.
    x_pad = jnp.zeros((n_p, f_p), jnp.bfloat16).at[:n, :f].set(
        x.astype(jnp.bfloat16))

    in_out_bytes = (a_pad.size * 2 + x_pad.size * 2 + w1_pad.size * 2 +
                    b1_pad.size * 4 + w2_pad.size * 2 + b2_pad.size * 4 +
                    n_p * c_p * 4)
    interm_bytes = n_p * (f_p + h_p + 2 * c_p) * 4   # f32 temporaries
    cost = pl.CostEstimate(
        flops=2 * n_p * n_p * (f_p + c_p) + 2 * n_p * f_p * h_p
              + 2 * n_p * h_p * c_p,
        transcendentals=n_p * c_p,
        bytes_accessed=in_out_bytes)
    vmem_bytes = min(max(2 * (in_out_bytes + interm_bytes) + (4 << 20),
                         32 << 20), 64 << 20)
    out_shape = jax.ShapeDtypeStruct((n_p, c_p), jnp.float32)

    # Fully-resident path when A (the dominant buffer) comfortably fits VMEM.
    resident_ok = (in_out_bytes + interm_bytes) <= (40 << 20)

    if resident_ok and not force_tiled:
        vmem = pl.BlockSpec(memory_space=pltpu.MemorySpace.VMEM)
        out_pad = pl.pallas_call(
            functools.partial(_gcn_fused_kernel, num_classes=num_classes),
            out_shape=out_shape,
            in_specs=[vmem] * 6,
            out_specs=vmem,
            compiler_params=pltpu.CompilerParams(vmem_limit_bytes=vmem_bytes),
            cost_estimate=cost,
        )(a_pad, x_pad, w1_pad, b1_pad, w2_pad, b2_pad)
    else:
        # 256-row tiles keep the 2x256x256 MXU (v6e/v7x) full; 128 otherwise.
        tm = 256 if (n_p % 256 == 0) else LANE
        out_pad = pl.pallas_call(
            functools.partial(_gcn_tiled_kernel, num_classes=num_classes, tm=tm),
            out_shape=out_shape,
            grid_spec=pltpu.PrefetchScalarGridSpec(
                num_scalar_prefetch=0,
                grid=(2, n_p // tm),
                in_specs=[
                    pl.BlockSpec((tm, n_p), lambda p, i: (i, 0)),   # A rows
                    pl.BlockSpec((n_p, f_p), lambda p, i: (0, 0)),  # X resident
                    pl.BlockSpec((f_p, h_p), lambda p, i: (0, 0)),  # W1
                    pl.BlockSpec((1, h_p), lambda p, i: (0, 0)),    # b1
                    pl.BlockSpec((h_p, c_p), lambda p, i: (0, 0)),  # W2
                    pl.BlockSpec((1, c_p), lambda p, i: (0, 0)),    # b2
                ],
                out_specs=pl.BlockSpec((tm, c_p), lambda p, i: (i, 0)),
                scratch_shapes=[pltpu.VMEM((n_p, c_p), jnp.bfloat16)],
            ),
            compiler_params=pltpu.CompilerParams(
                # Phase 1 of every row tile reads the scratch written by ALL
                # phase-0 tiles -> both axes must stay sequential.
                dimension_semantics=("arbitrary", "arbitrary"),
                vmem_limit_bytes=vmem_bytes),
            cost_estimate=cost,
        )(a_pad, x_pad, w1_pad, b1_pad, w2_pad, b2_pad)

    return out_pad[:n, :num_classes]


# ----------------------------------------------------------------------------
# Plain-JAX glue (built ONCE per graph / model, outside the jitted forward).
# ----------------------------------------------------------------------------
def normalized_adjacency(edge_index, num_nodes):
    """Symmetric GCN norm D^{-1/2} (A + I_missing) D^{-1/2} (PyG gcn_norm)."""
    src, dst = edge_index[0], edge_index[1]
    adj = jnp.zeros((num_nodes, num_nodes), jnp.float32).at[dst, src].add(1.0)
    has_self = jnp.diagonal(adj) > 0
    adj = adj + jnp.diag(jnp.where(has_self, 0.0, 1.0))
    deg = jnp.sum(adj, axis=1)
    dinv = jnp.where(deg > 0, jax.lax.rsqrt(deg), 0.0)
    return dinv[:, None] * adj * dinv[None, :]
    # TODO(synk): for large sparse graphs, replace dense A_hat propagation with
    # a CSR gather-accumulate kernel (PrefetchScalarGridSpec row-pointer path).


def prepare_adjacency(edge_index, num_nodes):
    a_hat = normalized_adjacency(edge_index, num_nodes)
    n_p = _round_up(num_nodes, LANE)
    a_pad = jnp.zeros((n_p, n_p), jnp.bfloat16).at[:num_nodes, :num_nodes].set(
        a_hat.astype(jnp.bfloat16))
    return a_hat, a_pad


def prepare_params(params, num_features, hidden, num_classes):
    f_p = _round_up(num_features, LANE)
    h_p = _round_up(hidden, LANE)
    c_p = _round_up(num_classes, LANE)
    return {
        "w1": jnp.zeros((f_p, h_p), jnp.bfloat16)
              .at[:num_features, :hidden].set(params["w1"].astype(jnp.bfloat16)),
        "b1": jnp.zeros((1, h_p), jnp.float32).at[0, :hidden].set(params["b1"]),
        "w2": jnp.zeros((h_p, c_p), jnp.bfloat16)
              .at[:hidden, :num_classes].set(params["w2"].astype(jnp.bfloat16)),
        "b2": jnp.zeros((1, c_p), jnp.float32)
              .at[0, :num_classes].set(params["b2"]),
    }


def glorot(key, shape):
    fan_in, fan_out = shape
    limit = jnp.sqrt(6.0 / (fan_in + fan_out))
    return jax.random.uniform(key, shape, jnp.float32, -limit, limit)


def reference_forward(a_hat, x, params):
    """Pure-JAX reference using the same bf16-input / f32-accumulate recipe."""
    bf = jnp.bfloat16
    a = a_hat.astype(bf)
    ax = jnp.dot(a, x.astype(bf), preferred_element_type=jnp.float32)
    h = jnp.dot(ax.astype(bf), params["w1"].astype(bf),
                preferred_element_type=jnp.float32) + params["b1"]
    h = jnp.maximum(h, 0.0)
    hw = jnp.dot(h.astype(bf), params["w2"].astype(bf),
                 preferred_element_type=jnp.float32)
    logits = jnp.dot(a, hw.astype(bf),
                     preferred_element_type=jnp.float32) + params["b2"]
    return jax.nn.log_softmax(logits, axis=1)


# ----------------------------------------------------------------------------
# Main
# ----------------------------------------------------------------------------
if __name__ == "__main__":
    num_nodes = 32
    num_features = 16
    hidden = 32
    num_classes = 8
    num_edges = 64

    key = jax.random.PRNGKey(0)
    k_x, k_src, k_dst, k_w1, k_w2 = jax.random.split(key, 5)

    x = jax.random.normal(k_x, (num_nodes, num_features), jnp.float32)
    edge_index = jnp.stack([
        jax.random.randint(k_src, (num_edges,), 0, num_nodes),
        jax.random.randint(k_dst, (num_edges,), 0, num_nodes),
    ]).astype(jnp.int32)

    params = {
        "w1": glorot(k_w1, (num_features, hidden)),
        "b1": jnp.zeros((hidden,), jnp.float32),
        "w2": glorot(k_w2, (hidden, num_classes)),
        "b2": jnp.zeros((num_classes,), jnp.float32),
    }

    # Pad/cast static operands once, outside the jitted forward.
    a_hat, a_pad = prepare_adjacency(edge_index, num_nodes)
    padded_params = prepare_params(params, num_features, hidden, num_classes)

    ref = reference_forward(a_hat, x, params)

    # Path 1: fused, fully VMEM-resident kernel (default for this size).
    out = jax.block_until_ready(
        gcn_net_forward(a_pad, x, padded_params, num_classes=num_classes))
    assert out.shape == (num_nodes, num_classes)
    assert jnp.allclose(out, ref, atol=1e-3, rtol=1e-3)

    # Path 2: row-tiled streaming kernel (large-N / v7x escape hatch).
    out_tiled = jax.block_until_ready(
        gcn_net_forward(a_pad, x, padded_params, num_classes=num_classes,
                        force_tiled=True))
    assert out_tiled.shape == (num_nodes, num_classes)
    assert jnp.allclose(out_tiled, ref, atol=1e-3, rtol=1e-3)

    print("KERNEL_OK")
</pallas_src>

<mosaic_0001>
module attributes {stable_mosaic.version = 11 : i64} {
  func.func @_gcn_fused_kernel(%arg0: memref<128x128xbf16, #tpu.memory_space<vmem>>, %arg1: memref<128x128xbf16, #tpu.memory_space<vmem>>, %arg2: memref<128x128xbf16, #tpu.memory_space<vmem>>, %arg3: memref<1x128xf32, #tpu.memory_space<vmem>>, %arg4: memref<128x128xbf16, #tpu.memory_space<vmem>>, %arg5: memref<1x128xf32, #tpu.memory_space<vmem>>, %arg6: memref<128x128xf32, #tpu.memory_space<vmem>>) attributes {dimension_semantics = [], scalar_prefetch = 0 : i64, scratch_operands = 0 : i64, tpu.core_type = #tpu.core_type<tc>} {
    %c0 = arith.constant 0 : index
    %c0_0 = arith.constant 0 : index
    %0 = vector.load %arg0[%c0, %c0_0] : memref<128x128xbf16, #tpu.memory_space<vmem>>, vector<128x128xbf16>
    %c0_1 = arith.constant 0 : index
    %c0_2 = arith.constant 0 : index
    %1 = vector.load %arg1[%c0_1, %c0_2] : memref<128x128xbf16, #tpu.memory_space<vmem>>, vector<128x128xbf16>
    %cst = arith.constant dense<0.000000e+00> : vector<128x128xf32>
    %2 = tpu.matmul %0, %1, %cst {dimension_numbers = #tpu.dot_dimension_numbers<[1], [0], [0], [1], [0, 0, 1, 1], [], []>} : vector<128x128xbf16>, vector<128x128xbf16>, vector<128x128xf32> -> vector<128x128xf32>
    %3 = arith.truncf %2 : vector<128x128xf32> to vector<128x128xbf16>
    %c0_3 = arith.constant 0 : index
    %c0_4 = arith.constant 0 : index
    %4 = vector.load %arg2[%c0_3, %c0_4] : memref<128x128xbf16, #tpu.memory_space<vmem>>, vector<128x128xbf16>
    %cst_5 = arith.constant dense<0.000000e+00> : vector<128x128xf32>
    %5 = tpu.matmul %3, %4, %cst_5 {dimension_numbers = #tpu.dot_dimension_numbers<[1], [0], [0], [1], [0, 0, 1, 1], [], []>} : vector<128x128xbf16>, vector<128x128xbf16>, vector<128x128xf32> -> vector<128x128xf32>
    %c0_6 = arith.constant 0 : index
    %c0_7 = arith.constant 0 : index
    %6 = vector.load %arg3[%c0_6, %c0_7] : memref<1x128xf32, #tpu.memory_space<vmem>>, vector<1x128xf32>
    %7 = vector.broadcast %6 : vector<1x128xf32> to vector<128x128xf32>
    %8 = arith.addf %5, %7 : vector<128x128xf32>
    %cst_8 = arith.constant 0.000000e+00 : f32
    %9 = vector.broadcast %cst_8 : f32 to vector<128x128xf32>
    %10 = arith.maximumf %8, %9 : vector<128x128xf32>
    %11 = arith.truncf %10 : vector<128x128xf32> to vector<128x128xbf16>
    %c0_9 = arith.constant 0 : index
    %c0_10 = arith.constant 0 : index
    %12 = vector.load %arg4[%c0_9, %c0_10] : memref<128x128xbf16, #tpu.memory_space<vmem>>, vector<128x128xbf16>
    %cst_11 = arith.constant dense<0.000000e+00> : vector<128x128xf32>
    %13 = tpu.matmul %11, %12, %cst_11 {dimension_numbers = #tpu.dot_dimension_numbers<[1], [0], [0], [1], [0, 0, 1, 1], [], []>} : vector<128x128xbf16>, vector<128x128xbf16>, vector<128x128xf32> -> vector<128x128xf32>
    %14 = arith.truncf %13 : vector<128x128xf32> to vector<128x128xbf16>
    %cst_12 = arith.constant dense<0.000000e+00> : vector<128x128xf32>
    %15 = tpu.matmul %0, %14, %cst_12 {dimension_numbers = #tpu.dot_dimension_numbers<[1], [0], [0], [1], [0, 0, 1, 1], [], []>} : vector<128x128xbf16>, vector<128x128xbf16>, vector<128x128xf32> -> vector<128x128xf32>
    %c0_13 = arith.constant 0 : index
    %c0_14 = arith.constant 0 : index
    %16 = vector.load %arg5[%c0_13, %c0_14] : memref<1x128xf32, #tpu.memory_space<vmem>>, vector<1x128xf32>
    %17 = vector.broadcast %16 : vector<1x128xf32> to vector<128x128xf32>
    %18 = arith.addf %15, %17 : vector<128x128xf32>
    %19 = tpu.iota {dimensions = array<i32: 1>} : vector<1x128xi32>
    %c8_i32 = arith.constant 8 : i32
    %20 = vector.broadcast %c8_i32 : i32 to vector<1x128xi32>
    %21 = arith.cmpi slt, %19, %20 : vector<1x128xi32>
    %cst_15 = arith.constant -1.000000e+30 : f32
    %22 = vector.shape_cast %21 : vector<1x128xi1> to vector<1x128xi1>
    %23 = vector.broadcast %22 : vector<1x128xi1> to vector<128x128xi1>
    %24 = vector.broadcast %cst_15 : f32 to vector<128x128xf32>
    %25 = arith.select %23, %18, %24 : vector<128x128xi1>, vector<128x128xf32>
    %cst_16 = arith.constant dense<0xFF800000> : vector<128xf32>
    %26 = vector.multi_reduction <maximumf>, %25, %cst_16 [1] : vector<128x128xf32> to vector<128xf32>
    %27 = vector.shape_cast %26 : vector<128xf32> to vector<128x1xf32>
    %28 = vector.broadcast %27 : vector<128x1xf32> to vector<128x128xf32>
    %29 = arith.subf %25, %28 : vector<128x128xf32>
    %30 = math.exp %29 : vector<128x128xf32>
    %cst_17 = arith.constant dense<0.000000e+00> : vector<128xf32>
    %31 = vector.multi_reduction <add>, %30, %cst_17 [1] : vector<128x128xf32> to vector<128xf32>
    %32 = vector.shape_cast %31 : vector<128xf32> to vector<128x1xf32>
    %33 = math.log %32 : vector<128x1xf32>
    %34 = vector.broadcast %33 : vector<128x1xf32> to vector<128x128xf32>
    %35 = arith.subf %29, %34 : vector<128x128xf32>
    %c0_18 = arith.constant 0 : index
    %c0_19 = arith.constant 0 : index
    %36 = vector.load %arg6[%c0_18, %c0_19] : memref<128x128xf32, #tpu.memory_space<vmem>>, vector<128x128xf32>
    tpu.vector_store %arg6[%c0_18, %c0_19], %35 {strides = array<i32>} : memref<128x128xf32, #tpu.memory_space<vmem>>, vector<128x128xf32>,
    return
  }
}

</mosaic_0001>

<llo_original>
// kernel: gcn_net_forward.1
$region0: #{gcn_net_forward.1}
  #allocation0 [shape = 'u32[]', space=smem, size = 0x4, offset = 0x4, fixed_abs, tag = 'smem constant byte address 0x4 - core index']
  #allocation1 [shape = 'u32[144,128]{1,0:T(1,128)}', space=vmem, size = 0x12000, scoped, tag = 'internal scratch']
  %s0 = inlined_call_operand.vmem [shape: bf16[128,128], index: 0, kind: input, shape index: {}]
  %s1 = inlined_call_operand.vmem [shape: bf16[128,128], index: 1, kind: input, shape index: {}]
  %s2 = inlined_call_operand.vmem [shape: bf16[128,128], index: 2, kind: input, shape index: {}]
  %s3 = inlined_call_operand.vmem [shape: f32[1,128], index: 3, kind: input, shape index: {}]
  %s4 = inlined_call_operand.hbm [shape: bf16[128,128], index: 4, kind: input, shape index: {}]
  %s5 = inlined_call_operand.vmem [shape: f32[1,128], index: 5, kind: input, shape index: {}]
  %s6 = inlined_call_operand.vmem [shape: f32[128,128], index: 6, kind: output, shape index: {}]
  %s7 = sld [smem:[#allocation0]]
  $region38: #{gcn_net_forward.1} parent=0
    _
  %s9 = ssub.s32 1, %s7
  %s10 = scalar_select 0, %s9, %s7
  $region1: #{gcn_net_forward.1} parent=0
    #allocation2 [shape = 'u8[32768]{0}', space=vmem, size = 0x8000, scoped, tag = 'input window, operand 4, single buffered']
    #allocation3 [shape = 's32[1]{0}', space=sflag, size = 0x4, scoped, tag = 'scoped memory for gcn_net_forward.1']
    %11 = vsyncpa [#allocation3], 0
    // Predicated region
    $region2: #{gcn_net_forward.1} parent=1 // pred_check
      _
    $region3: #{gcn_net_forward.1} parent=1 // pred_check_branch
      %13 = sbr.rel (0) target = $region5
    $region4: #{gcn_net_forward.1} parent=1 // pred_region
      _
    $region5: #{gcn_net_forward.1} parent=1 // pred_fallthru
      _
    // Predicated region
    $region6: #{gcn_net_forward.1} parent=1 // pred_check
      _
    $region7: #{gcn_net_forward.1} parent=1 // pred_check_branch
      %15 = sbr.rel (0) target = $region9
    $region8: #{gcn_net_forward.1} parent=1 // pred_region
      _
    $region9: #{gcn_net_forward.1} parent=1 // pred_fallthru
      _
    // Predicated region
    $region10: #{gcn_net_forward.1} parent=1 // pred_check
      _
    $region11: #{gcn_net_forward.1} parent=1 // pred_check_branch
      %17 = sbr.rel (0) target = $region13
    $region12: #{gcn_net_forward.1} parent=1 // pred_region
      _
    $region13: #{gcn_net_forward.1} parent=1 // pred_fallthru
      _
    // Predicated region
    $region14: #{gcn_net_forward.1} parent=1 // pred_check
      _
    $region15: #{gcn_net_forward.1} parent=1 // pred_check_branch
      %19 = sbr.rel (0) target = $region17
    $region16: #{gcn_net_forward.1} parent=1 // pred_region
      _
    $region17: #{gcn_net_forward.1} parent=1 // pred_fallthru
      _
    // Predicated region
    $region18: #{gcn_net_forward.1} parent=1 // pred_check
      _
    $region19: #{gcn_net_forward.1} parent=1 // pred_check_branch
      %21 = sbr.rel (0) target = $region21
    $region20: #{gcn_net_forward.1} parent=1 // pred_region
      %s23 = ssub.s32 1024, 1024
      %24 = vsyncadd [#allocation3], %s23
      %s25 = sshll.u32 [#allocation2], 4
      %s26 = int_to_ptr.vmem [resolvable:$true] %s25
      %31 = dma.hbm_to_vmem [thread:$0]  %s4, 1024, %s26, [#allocation3], 64, 64, 4
    $region21: #{gcn_net_forward.1} parent=1 // pred_fallthru
      _
    // Predicated region
    $region22: #{gcn_net_forward.1} parent=1 // pred_check
      _
    $region23: #{gcn_net_forward.1} parent=1 // pred_check_branch
      %33 = sbr.rel (0) target = $region25
    $region24: #{gcn_net_forward.1} parent=1 // pred_region
      _
    $region25: #{gcn_net_forward.1} parent=1 // pred_fallthru
      _
    // Predicated region
    $region26: #{gcn_net_forward.1} parent=1 // pred_check
      _
    $region27: #{gcn_net_forward.1} parent=1 // pred_check_branch
      %35 = sbr.rel (0) target = $region29
    $region28: #{gcn_net_forward.1} parent=1 // pred_region
      %36 = dma.done [#allocation3], 1024
    $region29: #{gcn_net_forward.1} parent=1 // pred_fallthru
      _
    %v38 = vld [vmem:[%s0] sm:$0xf]
    %v39 = vld [vmem:[%s0 + $0x4] sm:$0xf]
    %v40 = vld [vmem:[%s0 + $0x8] sm:$0xf]
    %v41 = vld [vmem:[%s0 + $0xc] sm:$0xf]
    %v42 = vld [vmem:[%s0 + $0x10] sm:$0xf]
    %v43 = vld [vmem:[%s0 + $0x14] sm:$0xf]
    %v44 = vld [vmem:[%s0 + $0x18] sm:$0xf]
    %v45 = vld [vmem:[%s0 + $0x1c] sm:$0xf]
    %v46 = vld [vmem:[%s0 + $0x20] sm:$0xf]
    %v47 = vld [vmem:[%s0 + $0x24] sm:$0xf]
    %v48 = vld [vmem:[%s0 + $0x28] sm:$0xf]
    %v49 = vld [vmem:[%s0 + $0x2c] sm:$0xf]
    %v50 = vld [vmem:[%s0 + $0x30] sm:$0xf]
    %v51 = vld [vmem:[%s0 + $0x34] sm:$0xf]
    %v52 = vld [vmem:[%s0 + $0x38] sm:$0xf]
    %v53 = vld [vmem:[%s0 + $0x3c] sm:$0xf]
    %v54 = vld [vmem:[%s1] sm:$0xf]
    %v55 = vld [vmem:[%s1 + $0x4] sm:$0xf]
    %v56 = vld [vmem:[%s1 + $0x8] sm:$0xf]
    %v57 = vld [vmem:[%s1 + $0xc] sm:$0xf]
    %v58 = vld [vmem:[%s1 + $0x10] sm:$0xf]
    %v59 = vld [vmem:[%s1 + $0x14] sm:$0xf]
    %v60 = vld [vmem:[%s1 + $0x18] sm:$0xf]
    %v61 = vld [vmem:[%s1 + $0x1c] sm:$0xf]
    %v62 = vld [vmem:[%s1 + $0x20] sm:$0xf]
    %v63 = vld [vmem:[%s1 + $0x24] sm:$0xf]
    %v64 = vld [vmem:[%s1 + $0x28] sm:$0xf]
    %v65 = vld [vmem:[%s1 + $0x2c] sm:$0xf]
    %v66 = vld [vmem:[%s1 + $0x30] sm:$0xf]
    %v67 = vld [vmem:[%s1 + $0x34] sm:$0xf]
    %v68 = vld [vmem:[%s1 + $0x38] sm:$0xf]
    %v69 = vld [vmem:[%s1 + $0x3c] sm:$0xf]
    %v86 = vunpack.c.l.b16 %v38
    %v87 = vunpack.c.l.b16 %v39
    %v88 = vunpack.c.l.b16 %v40
    %v89 = vunpack.c.l.b16 %v41
    %v90 = vunpack.c.l.b16 %v42
    %v91 = vunpack.c.l.b16 %v43
    %v92 = vunpack.c.l.b16 %v44
    %v93 = vunpack.c.l.b16 %v45
    %v94 = vunpack.c.l.b16 %v46
    %v95 = vunpack.c.l.b16 %v47
    %v96 = vunpack.c.l.b16 %v48
    %v97 = vunpack.c.l.b16 %v49
    %v98 = vunpack.c.l.b16 %v50
    %v99 = vunpack.c.l.b16 %v51
    %v100 = vunpack.c.l.b16 %v52
    %v101 = vunpack.c.l.b16 %v53
    %v102 = vpack.c.b16 %v87, %v86
    %v103 = vpack.c.b16 %v89, %v88
    %v104 = vpack.c.b16 %v91, %v90
    %v105 = vpack.c.b16 %v93, %v92
    %v106 = vpack.c.b16 %v95, %v94
    %v107 = vpack.c.b16 %v97, %v96
    %v108 = vpack.c.b16 %v99, %v98
    %v109 = vpack.c.b16 %v101, %v100
    %v134 = vunpack.c.l.b16 %v54
    %v135 = vunpack.c.l.b16 %v55
    %v136 = vunpack.c.l.b16 %v56
    %v137 = vunpack.c.l.b16 %v57
    %v138 = vunpack.c.l.b16 %v58
    %v139 = vunpack.c.l.b16 %v59
    %v140 = vunpack.c.l.b16 %v60
    %v141 = vunpack.c.l.b16 %v61
    %v142 = vunpack.c.l.b16 %v62
    %v143 = vunpack.c.l.b16 %v63
    %v144 = vunpack.c.l.b16 %v64
    %v145 = vunpack.c.l.b16 %v65
    %v146 = vunpack.c.l.b16 %v66
    %v147 = vunpack.c.l.b16 %v67
    %v148 = vunpack.c.l.b16 %v68
    %v149 = vunpack.c.l.b16 %v69
    %v150 = vpack.c.b16 %v135, %v134
    %v151 = vpack.c.b16 %v137, %v136
    %v152 = vpack.c.b16 %v139, %v138
    %v153 = vpack.c.b16 %v141, %v140
    %v154 = vpack.c.b16 %v143, %v142
    %v155 = vpack.c.b16 %v145, %v144
    %v156 = vpack.c.b16 %v147, %v146
    %v157 = vpack.c.b16 %v149, %v148
    %166 = vmatprep.subr.bf16.mxu0 0
    %167 = vmatpush1.bf16.msra.mxu0 %v157
    %168 = vmatprep.subr.bf16.mxu0 0
    %169 = vmatpush1.bf16.msra.mxu0 %v156
    %170 = vmatprep.subr.bf16.mxu0 0
    %171 = vmatpush1.bf16.msra.mxu0 %v155
    %172 = vmatprep.subr.bf16.mxu0 0
    %173 = vmatpush1.bf16.msra.mxu0 %v154
    %174 = vmatprep.subr.bf16.mxu0 0
    %175 = vmatpush1.bf16.msra.mxu0 %v153
    %176 = vmatprep.subr.bf16.mxu0 0
    %177 = vmatpush1.bf16.msra.mxu0 %v152
    %178 = vmatprep.subr.bf16.mxu0 0
    %179 = vmatpush1.bf16.msra.mxu0 %v151
    %180 = vmatprep.subr.bf16.mxu0 0
    %181 = vmatpush1.bf16.msra.mxu0 %v150
    %182 = vmatprep.subr.bf16.mxu0 0
    %183 = vmatpush2.bf16.msra.mxu0 0
    %184 = vmatprep.subr.bf16.mxu0 0
    %185 = vmatpush2.bf16.msra.mxu0 0
    %186 = vmatprep.subr.bf16.mxu0 0
    %187 = vmatpush2.bf16.msra.mxu0 0
    %188 = vmatprep.subr.bf16.mxu0 0
    %189 = vmatpush2.bf16.msra.mxu0 0
    %190 = vmatprep.subr.bf16.mxu0 0
    %191 = vmatpush2.bf16.msra.mxu0 0
    %192 = vmatprep.subr.bf16.mxu0 0
    %193 = vmatpush2.bf16.msra.mxu0 0
    %194 = vmatprep.subr.bf16.mxu0 0
    %195 = vmatpush2.bf16.msra.mxu0 0
    %196 = vmatprep.subr.bf16.mxu0 0
    %197 = vmatpush2.bf16.msra.mxu0 0
    %198 = vmatprep.mubr.bf16.mxu0 0
    %199 = vmatmul.mubr.bf16.gmra.mxu0 %v102
    %v200 = vpop.f32.mrf.mxu0
    %v201 = vadd.f32 0.0, %v200
    %v202 = vpop.f32.mrf.mxu0
    %v203 = vpop.f32.mrf.mxu0
    %v204 = vadd.f32 0.0, %v203
    %v205 = vpop.f32.mrf.mxu0
    %206 = vmatprep.mubr.bf16.mxu0 0
    %207 = vmatmul.mubr.bf16.gmra.mxu0 %v103
    %v208 = vpop.f32.mrf.mxu0
    %v209 = vadd.f32 0.0, %v208
    %v210 = vpop.f32.mrf.mxu0
    %v211 = vpop.f32.mrf.mxu0
    %v212 = vadd.f32 0.0, %v211
    %v213 = vpop.f32.mrf.mxu0
    %214 = vmatprep.mubr.bf16.mxu0 0
    %215 = vmatmul.mubr.bf16.gmra.mxu0 %v104
    %v216 = vpop.f32.mrf.mxu0
    %v217 = vadd.f32 0.0, %v216
    %v218 = vpop.f32.mrf.mxu0
    %v219 = vpop.f32.mrf.mxu0
    %v220 = vadd.f32 0.0, %v219
    %v221 = vpop.f32.mrf.mxu0
    %222 = vmatprep.mubr.bf16.mxu0 0
    %223 = vmatmul.mubr.bf16.gmra.mxu0 %v105
    %v224 = vpop.f32.mrf.mxu0
    %v225 = vadd.f32 0.0, %v224
    %v226 = vpop.f32.mrf.mxu0
    %v227 = vpop.f32.mrf.mxu0
    %v228 = vadd.f32 0.0, %v227
    %v229 = vpop.f32.mrf.mxu0
    %230 = vmatprep.mubr.bf16.mxu0 0
    %231 = vmatmul.mubr.bf16.gmra.mxu0 %v106
    %v232 = vpop.f32.mrf.mxu0
    %v233 = vadd.f32 0.0, %v232
    %v234 = vpop.f32.mrf.mxu0
    %v235 = vpop.f32.mrf.mxu0
    %v236 = vadd.f32 0.0, %v235
    %v237 = vpop.f32.mrf.mxu0
    %238 = vmatprep.mubr.bf16.mxu0 0
    %239 = vmatmul.mubr.bf16.gmra.mxu0 %v107
    %v240 = vpop.f32.mrf.mxu0
    %v241 = vadd.f32 0.0, %v240
    %v242 = vpop.f32.mrf.mxu0
    %v243 = vpop.f32.mrf.mxu0
    %v244 = vadd.f32 0.0, %v243
    %v245 = vpop.f32.mrf.mxu0
    %246 = vmatprep.mubr.bf16.mxu0 0
    %247 = vmatmul.mubr.bf16.gmra.mxu0 %v108
    %v248 = vpop.f32.mrf.mxu0
    %v249 = vadd.f32 0.0, %v248
    %v250 = vpop.f32.mrf.mxu0
    %v251 = vpop.f32.mrf.mxu0
    %v252 = vadd.f32 0.0, %v251
    %v253 = vpop.f32.mrf.mxu0
    %254 = vmatprep.mubr.bf16.mxu0 0
    %255 = vmatmul.mubr.bf16.gmra.mxu0 %v109
    %v256 = vpop.f32.mrf.mxu0
    %v257 = vadd.f32 0.0, %v256
    %v258 = vpop.f32.mrf.mxu0
    %v259 = vpop.f32.mrf.mxu0
    %v260 = vadd.f32 0.0, %v259
    %v261 = vpop.f32.mrf.mxu0
    %262 = vdwg.mxu0
    %v263 = vpack.c.bf16 %v204, %v201
    %v264 = vpack.c.bf16 %v212, %v209
    %v265 = vpack.c.bf16 %v220, %v217
    %v266 = vpack.c.bf16 %v228, %v225
    %v267 = vpack.c.bf16 %v236, %v233
    %v268 = vpack.c.bf16 %v244, %v241
    %v269 = vpack.c.bf16 %v252, %v249
    %v270 = vpack.c.bf16 %v260, %v257
    %v271 = vld [vmem:[%s2] sm:$0xf]
    %v272 = vld [vmem:[%s2 + $0x4] sm:$0xf]
    %v273 = vld [vmem:[%s2 + $0x8] sm:$0xf]
    %v274 = vld [vmem:[%s2 + $0xc] sm:$0xf]
    %v275 = vld [vmem:[%s2 + $0x10] sm:$0xf]
    %v276 = vld [vmem:[%s2 + $0x14] sm:$0xf]
    %v277 = vld [vmem:[%s2 + $0x18] sm:$0xf]
    %v278 = vld [vmem:[%s2 + $0x1c] sm:$0xf]
    %v279 = vld [vmem:[%s2 + $0x20] sm:$0xf]
    %v280 = vld [vmem:[%s2 + $0x24] sm:$0xf]
    %v281 = vld [vmem:[%s2 + $0x28] sm:$0xf]
    %v282 = vld [vmem:[%s2 + $0x2c] sm:$0xf]
    %v283 = vld [vmem:[%s2 + $0x30] sm:$0xf]
    %v284 = vld [vmem:[%s2 + $0x34] sm:$0xf]
    %v285 = vld [vmem:[%s2 + $0x38] sm:$0xf]
    %v286 = vld [vmem:[%s2 + $0x3c] sm:$0xf]
    %v287 = vld [vmem:[%s3] sm:$0x1]
    %v289 = vlaneseq
    %v290 = vshrl.u32 %v289, 7
    %v291 = vsub.s32 0, %v290
    %v292 = vrot.slane %v287, %v291
    %v310 = vunpack.c.l.b16 %v271
    %v311 = vunpack.c.l.b16 %v272
    %v312 = vunpack.c.l.b16 %v273
    %v313 = vunpack.c.l.b16 %v274
    %v314 = vunpack.c.l.b16 %v275
    %v315 = vunpack.c.l.b16 %v276
    %v316 = vunpack.c.l.b16 %v277
    %v317 = vunpack.c.l.b16 %v278
    %v318 = vunpack.c.l.b16 %v279
    %v319 = vunpack.c.l.b16 %v280
    %v320 = vunpack.c.l.b16 %v281
    %v321 = vunpack.c.l.b16 %v282
    %v322 = vunpack.c.l.b16 %v283
    %v323 = vunpack.c.l.b16 %v284
    %v324 = vunpack.c.l.b16 %v285
    %v325 = vunpack.c.l.b16 %v286
    %v326 = vpack.c.b16 %v311, %v310
    %v327 = vpack.c.b16 %v313, %v312
    %v328 = vpack.c.b16 %v315, %v314
    %v329 = vpack.c.b16 %v317, %v316
    %v330 = vpack.c.b16 %v319, %v318
    %v331 = vpack.c.b16 %v321, %v320
    %v332 = vpack.c.b16 %v323, %v322
    %v333 = vpack.c.b16 %v325, %v324
    %342 = vmatprep.subr.bf16.mxu0 0
    %343 = vmatpush1.bf16.msra.mxu0 %v333
    %344 = vmatprep.subr.bf16.mxu0 0
    %345 = vmatpush1.bf16.msra.mxu0 %v332
    %346 = vmatprep.subr.bf16.mxu0 0
    %347 = vmatpush1.bf16.msra.mxu0 %v331
    %348 = vmatprep.subr.bf16.mxu0 0
    %349 = vmatpush1.bf16.msra.mxu0 %v330
    %350 = vmatprep.subr.bf16.mxu0 0
    %351 = vmatpush1.bf16.msra.mxu0 %v329
    %352 = vmatprep.subr.bf16.mxu0 0
    %353 = vmatpush1.bf16.msra.mxu0 %v328
    %354 = vmatprep.subr.bf16.mxu0 0
    %355 = vmatpush1.bf16.msra.mxu0 %v327
    %356 = vmatprep.subr.bf16.mxu0 0
    %357 = vmatpush1.bf16.msra.mxu0 %v326
    %358 = vmatprep.subr.bf16.mxu0 0
    %359 = vmatpush2.bf16.msra.mxu0 0
    %360 = vmatprep.subr.bf16.mxu0 0
    %361 = vmatpush2.bf16.msra.mxu0 0
    %362 = vmatprep.subr.bf16.mxu0 0
    %363 = vmatpush2.bf16.msra.mxu0 0
    %364 = vmatprep.subr.bf16.mxu0 0
    %365 = vmatpush2.bf16.msra.mxu0 0
    %366 = vmatprep.subr.bf16.mxu0 0
    %367 = vmatpush2.bf16.msra.mxu0 0
    %368 = vmatprep.subr.bf16.mxu0 0
    %369 = vmatpush2.bf16.msra.mxu0 0
    %370 = vmatprep.subr.bf16.mxu0 0
    %371 = vmatpush2.bf16.msra.mxu0 0
    %372 = vmatprep.subr.bf16.mxu0 0
    %373 = vmatpush2.bf16.msra.mxu0 0
    %374 = vmatprep.mubr.bf16.mxu0 0
    %375 = vmatmul.mubr.bf16.gmra.mxu0 %v263
    %v376 = vpop.f32.mrf.mxu0
    %v377 = vadd.f32 %v292, %v376
    %v378 = vpop.f32.mrf.mxu0
    %v379 = vpop.f32.mrf.mxu0
    %v380 = vadd.f32 %v292, %v379
    %v381 = vpop.f32.mrf.mxu0
    %382 = vmatprep.mubr.bf16.mxu0 0
    %383 = vmatmul.mubr.bf16.gmra.mxu0 %v264
    %v384 = vpop.f32.mrf.mxu0
    %v385 = vadd.f32 %v292, %v384
    %v386 = vpop.f32.mrf.mxu0
    %v387 = vpop.f32.mrf.mxu0
    %v388 = vadd.f32 %v292, %v387
    %v389 = vpop.f32.mrf.mxu0
    %390 = vmatprep.mubr.bf16.mxu0 0
    %391 = vmatmul.mubr.bf16.gmra.mxu0 %v265
    %v392 = vpop.f32.mrf.mxu0
    %v393 = vadd.f32 %v292, %v392
    %v394 = vpop.f32.mrf.mxu0
    %v395 = vpop.f32.mrf.mxu0
    %v396 = vadd.f32 %v292, %v395
    %v397 = vpop.f32.mrf.mxu0
    %398 = vmatprep.mubr.bf16.mxu0 0
    %399 = vmatmul.mubr.bf16.gmra.mxu0 %v266
    %v400 = vpop.f32.mrf.mxu0
    %v401 = vadd.f32 %v292, %v400
    %v402 = vpop.f32.mrf.mxu0
    %v403 = vpop.f32.mrf.mxu0
    %v404 = vadd.f32 %v292, %v403
    %v405 = vpop.f32.mrf.mxu0
    %406 = vmatprep.mubr.bf16.mxu0 0
    %407 = vmatmul.mubr.bf16.gmra.mxu0 %v267
    %v408 = vpop.f32.mrf.mxu0
    %v409 = vadd.f32 %v292, %v408
    %v410 = vpop.f32.mrf.mxu0
    %v411 = vpop.f32.mrf.mxu0
    %v412 = vadd.f32 %v292, %v411
    %v413 = vpop.f32.mrf.mxu0
    %414 = vmatprep.mubr.bf16.mxu0 0
    %415 = vmatmul.mubr.bf16.gmra.mxu0 %v268
    %v416 = vpop.f32.mrf.mxu0
    %v417 = vadd.f32 %v292, %v416
    %v418 = vpop.f32.mrf.mxu0
    %v419 = vpop.f32.mrf.mxu0
    %v420 = vadd.f32 %v292, %v419
    %v421 = vpop.f32.mrf.mxu0
    %422 = vmatprep.mubr.bf16.mxu0 0
    %423 = vmatmul.mubr.bf16.gmra.mxu0 %v269
    %v424 = vpop.f32.mrf.mxu0
    %v425 = vadd.f32 %v292, %v424
    %v426 = vpop.f32.mrf.mxu0
    %v427 = vpop.f32.mrf.mxu0
    %v428 = vadd.f32 %v292, %v427
    %v429 = vpop.f32.mrf.mxu0
    %430 = vmatprep.mubr.bf16.mxu0 0
    %431 = vmatmul.mubr.bf16.gmra.mxu0 %v270
    %v432 = vpop.f32.mrf.mxu0
    %v433 = vadd.f32 %v292, %v432
    %v434 = vpop.f32.mrf.mxu0
    %v435 = vpop.f32.mrf.mxu0
    %v436 = vadd.f32 %v292, %v435
    %v437 = vpop.f32.mrf.mxu0
    %438 = vdwg.mxu0
    %v439 = vmax.f32 %v377, 0.0
    %v440 = vmax.f32 %v380, 0.0
    %v441 = vmax.f32 %v385, 0.0
    %v442 = vmax.f32 %v388, 0.0
    %v443 = vmax.f32 %v393, 0.0
    %v444 = vmax.f32 %v396, 0.0
    %v445 = vmax.f32 %v401, 0.0
    %v446 = vmax.f32 %v404, 0.0
    %v447 = vmax.f32 %v409, 0.0
    %v448 = vmax.f32 %v412, 0.0
    %v449 = vmax.f32 %v417, 0.0
    %v450 = vmax.f32 %v420, 0.0
    %v451 = vmax.f32 %v425, 0.0
    %v452 = vmax.f32 %v428, 0.0
    %v453 = vmax.f32 %v433, 0.0
    %v454 = vmax.f32 %v436, 0.0
    %v455 = vpack.c.bf16 %v440, %v439
    %v456 = vpack.c.bf16 %v442, %v441
    %v457 = vpack.c.bf16 %v444, %v443
    %v458 = vpack.c.bf16 %v446, %v445
    %v459 = vpack.c.bf16 %v448, %v447
    %v460 = vpack.c.bf16 %v450, %v449
    %v461 = vpack.c.bf16 %v452, %v451
    %v462 = vpack.c.bf16 %v454, %v453
    %v463 = vld [vmem:[#allocation2] sm:$0xf]
    %v464 = vld [vmem:[#allocation2 + $0x4] sm:$0xf]
    %v465 = vld [vmem:[#allocation2 + $0x8] sm:$0xf]
    %v466 = vld [vmem:[#allocation2 + $0xc] sm:$0xf]
    %v467 = vld [vmem:[#allocation2 + $0x10] sm:$0xf]
    %v468 = vld [vmem:[#allocation2 + $0x14] sm:$0xf]
    %v469 = vld [vmem:[#allocation2 + $0x18] sm:$0xf]
    %v470 = vld [vmem:[#allocation2 + $0x1c] sm:$0xf]
    %v471 = vld [vmem:[#allocation2 + $0x20] sm:$0xf]
    %v472 = vld [vmem:[#allocation2 + $0x24] sm:$0xf]
    %v473 = vld [vmem:[#allocation2 + $0x28] sm:$0xf]
    %v474 = vld [vmem:[#allocation2 + $0x2c] sm:$0xf]
    %v475 = vld [vmem:[#allocation2 + $0x30] sm:$0xf]
    %v476 = vld [vmem:[#allocation2 + $0x34] sm:$0xf]
    %v477 = vld [vmem:[#allocation2 + $0x38] sm:$0xf]
    %v478 = vld [vmem:[#allocation2 + $0x3c] sm:$0xf]
    %v495 = vunpack.c.l.b16 %v463
    %v496 = vunpack.c.l.b16 %v464
    %v497 = vunpack.c.l.b16 %v465
    %v498 = vunpack.c.l.b16 %v466
    %v499 = vunpack.c.l.b16 %v467
    %v500 = vunpack.c.l.b16 %v468
    %v501 = vunpack.c.l.b16 %v469
    %v502 = vunpack.c.l.b16 %v470
    %v503 = vunpack.c.l.b16 %v471
    %v504 = vunpack.c.l.b16 %v472
    %v505 = vunpack.c.l.b16 %v473
    %v506 = vunpack.c.l.b16 %v474
    %v507 = vunpack.c.l.b16 %v475
    %v508 = vunpack.c.l.b16 %v476
    %v509 = vunpack.c.l.b16 %v477
    %v510 = vunpack.c.l.b16 %v478
    %v511 = vpack.c.b16 %v496, %v495
    %v512 = vpack.c.b16 %v498, %v497
    %v513 = vpack.c.b16 %v500, %v499
    %v514 = vpack.c.b16 %v502, %v501
    %v515 = vpack.c.b16 %v504, %v503
    %v516 = vpack.c.b16 %v506, %v505
    %v517 = vpack.c.b16 %v508, %v507
    %v518 = vpack.c.b16 %v510, %v509
    %527 = vmatprep.subr.bf16.mxu0 0
    %528 = vmatpush1.bf16.msra.mxu0 %v518
    %529 = vmatprep.subr.bf16.mxu0 0
    %530 = vmatpush1.bf16.msra.mxu0 %v517
    %531 = vmatprep.subr.bf16.mxu0 0
    %532 = vmatpush1.bf16.msra.mxu0 %v516
    %533 = vmatprep.subr.bf16.mxu0 0
    %534 = vmatpush1.bf16.msra.mxu0 %v515
    %535 = vmatprep.subr.bf16.mxu0 0
    %536 = vmatpush1.bf16.msra.mxu0 %v514
    %537 = vmatprep.subr.bf16.mxu0 0
    %538 = vmatpush1.bf16.msra.mxu0 %v513
    %539 = vmatprep.subr.bf16.mxu0 0
    %540 = vmatpush1.bf16.msra.mxu0 %v512
    %541 = vmatprep.subr.bf16.mxu0 0
    %542 = vmatpush1.bf16.msra.mxu0 %v511
    %543 = vmatprep.subr.bf16.mxu0 0
    %544 = vmatpush2.bf16.msra.mxu0 0
    %545 = vmatprep.subr.bf16.mxu0 0
    %546 = vmatpush2.bf16.msra.mxu0 0
    %547 = vmatprep.subr.bf16.mxu0 0
    %548 = vmatpush2.bf16.msra.mxu0 0
    %549 = vmatprep.subr.bf16.mxu0 0
    %550 = vmatpush2.bf16.msra.mxu0 0
    %551 = vmatprep.subr.bf16.mxu0 0
    %552 = vmatpush2.bf16.msra.mxu0 0
    %553 = vmatprep.subr.bf16.mxu0 0
    %554 = vmatpush2.bf16.msra.mxu0 0
    %555 = vmatprep.subr.bf16.mxu0 0
    %556 = vmatpush2.bf16.msra.mxu0 0
    %557 = vmatprep.subr.bf16.mxu0 0
    %558 = vmatpush2.bf16.msra.mxu0 0
    %559 = vmatprep.mubr.bf16.mxu0 0
    %560 = vmatmul.mubr.bf16.gmra.mxu0 %v455
    %v561 = vpop.f32.mrf.mxu0
    %v562 = vadd.f32 0.0, %v561
    %v563 = vpop.f32.mrf.mxu0
    %v564 = vpop.f32.mrf.mxu0
    %v565 = vadd.f32 0.0, %v564
    %v566 = vpop.f32.mrf.mxu0
    %567 = vmatprep.mubr.bf16.mxu0 0
    %568 = vmatmul.mubr.bf16.gmra.mxu0 %v456
    %v569 = vpop.f32.mrf.mxu0
    %v570 = vadd.f32 0.0, %v569
    %v571 = vpop.f32.mrf.mxu0
    %v572 = vpop.f32.mrf.mxu0
    %v573 = vadd.f32 0.0, %v572
    %v574 = vpop.f32.mrf.mxu0
    %575 = vmatprep.mubr.bf16.mxu0 0
    %576 = vmatmul.mubr.bf16.gmra.mxu0 %v457
    %v577 = vpop.f32.mrf.mxu0
    %v578 = vadd.f32 0.0, %v577
    %v579 = vpop.f32.mrf.mxu0
    %v580 = vpop.f32.mrf.mxu0
    %v581 = vadd.f32 0.0, %v580
    %v582 = vpop.f32.mrf.mxu0
    %583 = vmatprep.mubr.bf16.mxu0 0
    %584 = vmatmul.mubr.bf16.gmra.mxu0 %v458
    %v585 = vpop.f32.mrf.mxu0
    %v586 = vadd.f32 0.0, %v585
    %v587 = vpop.f32.mrf.mxu0
    %v588 = vpop.f32.mrf.mxu0
    %v589 = vadd.f32 0.0, %v588
    %v590 = vpop.f32.mrf.mxu0
    %591 = vmatprep.mubr.bf16.mxu0 0
    %592 = vmatmul.mubr.bf16.gmra.mxu0 %v459
    %v593 = vpop.f32.mrf.mxu0
    %v594 = vadd.f32 0.0, %v593
    %v595 = vpop.f32.mrf.mxu0
    %v596 = vpop.f32.mrf.mxu0
    %v597 = vadd.f32 0.0, %v596
    %v598 = vpop.f32.mrf.mxu0
    %599 = vmatprep.mubr.bf16.mxu0 0
    %600 = vmatmul.mubr.bf16.gmra.mxu0 %v460
    %v601 = vpop.f32.mrf.mxu0
    %v602 = vadd.f32 0.0, %v601
    %v603 = vpop.f32.mrf.mxu0
    %v604 = vpop.f32.mrf.mxu0
    %v605 = vadd.f32 0.0, %v604
    %v606 = vpop.f32.mrf.mxu0
    %607 = vmatprep.mubr.bf16.mxu0 0
    %608 = vmatmul.mubr.bf16.gmra.mxu0 %v461
    %v609 = vpop.f32.mrf.mxu0
    %v610 = vadd.f32 0.0, %v609
    %v611 = vpop.f32.mrf.mxu0
    %v612 = vpop.f32.mrf.mxu0
    %v613 = vadd.f32 0.0, %v612
    %v614 = vpop.f32.mrf.mxu0
    %615 = vmatprep.mubr.bf16.mxu0 0
    %616 = vmatmul.mubr.bf16.gmra.mxu0 %v462
    %v617 = vpop.f32.mrf.mxu0
    %v618 = vadd.f32 0.0, %v617
    %v619 = vpop.f32.mrf.mxu0
    %v620 = vpop.f32.mrf.mxu0
    %v621 = vadd.f32 0.0, %v620
    %v622 = vpop.f32.mrf.mxu0
    %623 = vdwg.mxu0
    %v624 = vpack.c.bf16 %v565, %v562
    %v625 = vpack.c.bf16 %v573, %v570
    %v626 = vpack.c.bf16 %v581, %v578
    %v627 = vpack.c.bf16 %v589, %v586
    %v628 = vpack.c.bf16 %v597, %v594
    %v629 = vpack.c.bf16 %v605, %v602
    %v630 = vpack.c.bf16 %v613, %v610
    %v631 = vpack.c.bf16 %v621, %v618
    %v632 = vld [vmem:[%s5] sm:$0x1]
    %v634 = vlaneseq
    %v635 = vshrl.u32 %v634, 7
    %v636 = vsub.s32 0, %v635
    %v637 = vrot.slane %v632, %v636
    %639 = vmatprep.subr.bf16.mxu0 0
    %640 = vmatpush1.bf16.msra.mxu0 %v631
    %641 = vmatprep.subr.bf16.mxu0 0
    %642 = vmatpush1.bf16.msra.mxu0 %v630
    %643 = vmatprep.subr.bf16.mxu0 0
    %644 = vmatpush1.bf16.msra.mxu0 %v629
    %645 = vmatprep.subr.bf16.mxu0 0
    %646 = vmatpush1.bf16.msra.mxu0 %v628
    %647 = vmatprep.subr.bf16.mxu0 0
    %648 = vmatpush1.bf16.msra.mxu0 %v627
    %649 = vmatprep.subr.bf16.mxu0 0
    %650 = vmatpush1.bf16.msra.mxu0 %v626
    %651 = vmatprep.subr.bf16.mxu0 0
    %652 = vmatpush1.bf16.msra.mxu0 %v625
    %653 = vmatprep.subr.bf16.mxu0 0
    %654 = vmatpush1.bf16.msra.mxu0 %v624
    %655 = vmatprep.subr.bf16.mxu0 0
    %656 = vmatpush2.bf16.msra.mxu0 0
    %657 = vmatprep.subr.bf16.mxu0 0
    %658 = vmatpush2.bf16.msra.mxu0 0
    %659 = vmatprep.subr.bf16.mxu0 0
    %660 = vmatpush2.bf16.msra.mxu0 0
    %661 = vmatprep.subr.bf16.mxu0 0
    %662 = vmatpush2.bf16.msra.mxu0 0
    %663 = vmatprep.subr.bf16.mxu0 0
    %664 = vmatpush2.bf16.msra.mxu0 0
    %665 = vmatprep.subr.bf16.mxu0 0
    %666 = vmatpush2.bf16.msra.mxu0 0
    %667 = vmatprep.subr.bf16.mxu0 0
    %668 = vmatpush2.bf16.msra.mxu0 0
    %669 = vmatprep.subr.bf16.mxu0 0
    %670 = vmatpush2.bf16.msra.mxu0 0
    %671 = vmatprep.mubr.bf16.mxu0 0
    %672 = vmatmul.mubr.bf16.gmra.mxu0 %v102
    %v673 = vpop.f32.mrf.mxu0
    %v674 = vadd.f32 %v637, %v673
    %v675 = vpop.f32.mrf.mxu0
    %v676 = vpop.f32.mrf.mxu0
    %v677 = vadd.f32 %v637, %v676
    %v678 = vpop.f32.mrf.mxu0
    %679 = vmatprep.mubr.bf16.mxu0 0
    %680 = vmatmul.mubr.bf16.gmra.mxu0 %v103
    %v681 = vpop.f32.mrf.mxu0
    %v682 = vadd.f32 %v637, %v681
    %v683 = vpop.f32.mrf.mxu0
    %v684 = vpop.f32.mrf.mxu0
    %v685 = vadd.f32 %v637, %v684
    %v686 = vpop.f32.mrf.mxu0
    %687 = vmatprep.mubr.bf16.mxu0 0
    %688 = vmatmul.mubr.bf16.gmra.mxu0 %v104
    %v689 = vpop.f32.mrf.mxu0
    %v690 = vadd.f32 %v637, %v689
    %v691 = vpop.f32.mrf.mxu0
    %v692 = vpop.f32.mrf.mxu0
    %v693 = vadd.f32 %v637, %v692
    %v694 = vpop.f32.mrf.mxu0
    %695 = vmatprep.mubr.bf16.mxu0 0
    %696 = vmatmul.mubr.bf16.gmra.mxu0 %v105
    %v697 = vpop.f32.mrf.mxu0
    %v698 = vadd.f32 %v637, %v697
    %v699 = vpop.f32.mrf.mxu0
    %v700 = vpop.f32.mrf.mxu0
    %v701 = vadd.f32 %v637, %v700
    %v702 = vpop.f32.mrf.mxu0
    %703 = vmatprep.mubr.bf16.mxu0 0
    %704 = vmatmul.mubr.bf16.gmra.mxu0 %v106
    %v705 = vpop.f32.mrf.mxu0
    %v706 = vadd.f32 %v637, %v705
    %v707 = vpop.f32.mrf.mxu0
    %v708 = vpop.f32.mrf.mxu0
    %v709 = vadd.f32 %v637, %v708
    %v710 = vpop.f32.mrf.mxu0
    %711 = vmatprep.mubr.bf16.mxu0 0
    %712 = vmatmul.mubr.bf16.gmra.mxu0 %v107
    %v713 = vpop.f32.mrf.mxu0
    %v714 = vadd.f32 %v637, %v713
    %v715 = vpop.f32.mrf.mxu0
    %v716 = vpop.f32.mrf.mxu0
    %v717 = vadd.f32 %v637, %v716
    %v718 = vpop.f32.mrf.mxu0
    %719 = vmatprep.mubr.bf16.mxu0 0
    %720 = vmatmul.mubr.bf16.gmra.mxu0 %v108
    %v721 = vpop.f32.mrf.mxu0
    %v722 = vadd.f32 %v637, %v721
    %v723 = vpop.f32.mrf.mxu0
    %v724 = vpop.f32.mrf.mxu0
    %v725 = vadd.f32 %v637, %v724
    %v726 = vpop.f32.mrf.mxu0
    %727 = vmatprep.mubr.bf16.mxu0 0
    %728 = vmatmul.mubr.bf16.gmra.mxu0 %v109
    %v729 = vpop.f32.mrf.mxu0
    %v730 = vadd.f32 %v637, %v729
    %v731 = vpop.f32.mrf.mxu0
    %v732 = vpop.f32.mrf.mxu0
    %v733 = vadd.f32 %v637, %v732
    %v734 = vpop.f32.mrf.mxu0
    %735 = vdwg.mxu0
    %v736 = vlaneseq
    %v737 = vand.u32 %v736, 127
    %vm738 = vcmp.lt.s32.totalorder %v737, 8
    %v739 = vsel %vm738, 1, 0
    %vm740 = vcmp.eq.s32.totalorder %v739, 1
    %v741 = vsel %vm740, %v674, -1e+30
    %v742 = vsel %vm740, %v677, -1e+30
    %v743 = vsel %vm740, %v682, -1e+30
    %v744 = vsel %vm740, %v685, -1e+30
    %v745 = vsel %vm740, %v690, -1e+30
    %v746 = vsel %vm740, %v693, -1e+30
    %v747 = vsel %vm740, %v698, -1e+30
    %v748 = vsel %vm740, %v701, -1e+30
    %v749 = vsel %vm740, %v706, -1e+30
    %v750 = vsel %vm740, %v709, -1e+30
    %v751 = vsel %vm740, %v714, -1e+30
    %v752 = vsel %vm740, %v717, -1e+30
    %v753 = vsel %vm740, %v722, -1e+30
    %v754 = vsel %vm740, %v725, -1e+30
    %v755 = vsel %vm740, %v730, -1e+30
    %v756 = vsel %vm740, %v733, -1e+30
    %757 = vmax.xlane.f32.xlu0 %v741
    %v758 = vpop.xlane.xlu0 %757
    %759 = vmax.xlane.f32.xlu0 %v742
    %v760 = vpop.xlane.xlu0 %759
    %761 = vmax.xlane.f32.xlu0 %v743
    %v762 = vpop.xlane.xlu0 %761
    %763 = vmax.xlane.f32.xlu0 %v744
    %v764 = vpop.xlane.xlu0 %763
    %765 = vmax.xlane.f32.xlu0 %v745
    %v766 = vpop.xlane.xlu0 %765
    %767 = vmax.xlane.f32.xlu0 %v746
    %v768 = vpop.xlane.xlu0 %767
    %769 = vmax.xlane.f32.xlu0 %v747
    %v770 = vpop.xlane.xlu0 %769
    %771 = vmax.xlane.f32.xlu0 %v748
    %v772 = vpop.xlane.xlu0 %771
    %773 = vmax.xlane.f32.xlu0 %v749
    %v774 = vpop.xlane.xlu0 %773
    %775 = vmax.xlane.f32.xlu0 %v750
    %v776 = vpop.xlane.xlu0 %775
    %777 = vmax.xlane.f32.xlu0 %v751
    %v778 = vpop.xlane.xlu0 %777
    %779 = vmax.xlane.f32.xlu0 %v752
    %v780 = vpop.xlane.xlu0 %779
    %781 = vmax.xlane.f32.xlu0 %v753
    %v782 = vpop.xlane.xlu0 %781
    %783 = vmax.xlane.f32.xlu0 %v754
    %v784 = vpop.xlane.xlu0 %783
    %785 = vmax.xlane.f32.xlu0 %v755
    %v786 = vpop.xlane.xlu0 %785
    %787 = vmax.xlane.f32.xlu0 %v756
    %v788 = vpop.xlane.xlu0 %787
    %v789 = vsub.f32 %v741, %v758
    %v790 = vsub.f32 %v742, %v760
    %v791 = vsub.f32 %v743, %v762
    %v792 = vsub.f32 %v744, %v764
    %v793 = vsub.f32 %v745, %v766
    %v794 = vsub.f32 %v746, %v768
    %v795 = vsub.f32 %v747, %v770
    %v796 = vsub.f32 %v748, %v772
    %v797 = vsub.f32 %v749, %v774
    %v798 = vsub.f32 %v750, %v776
    %v799 = vsub.f32 %v751, %v778
    %v800 = vsub.f32 %v752, %v780
    %v801 = vsub.f32 %v753, %v782
    %v802 = vsub.f32 %v754, %v784
    %v803 = vsub.f32 %v755, %v786
    %v804 = vsub.f32 %v756, %v788
    %v805 = vmul.f32 %v789, 1.442695
    %v806 = vpow.pop %v805
    %v807 = vmul.f32 %v790, 1.442695
    %v808 = vpow.pop %v807
    %v809 = vmul.f32 %v791, 1.442695
    %v810 = vpow.pop %v809
    %v811 = vmul.f32 %v792, 1.442695
    %v812 = vpow.pop %v811
    %v813 = vmul.f32 %v793, 1.442695
    %v814 = vpow.pop %v813
    %v815 = vmul.f32 %v794, 1.442695
    %v816 = vpow.pop %v815
    %v817 = vmul.f32 %v795, 1.442695
    %v818 = vpow.pop %v817
    %v819 = vmul.f32 %v796, 1.442695
    %v820 = vpow.pop %v819
    %v821 = vmul.f32 %v797, 1.442695
    %v822 = vpow.pop %v821
    %v823 = vmul.f32 %v798, 1.442695
    %v824 = vpow.pop %v823
    %v825 = vmul.f32 %v799, 1.442695
    %v826 = vpow.pop %v825
    %v827 = vmul.f32 %v800, 1.442695
    %v828 = vpow.pop %v827
    %v829 = vmul.f32 %v801, 1.442695
    %v830 = vpow.pop %v829
    %v831 = vmul.f32 %v802, 1.442695
    %v832 = vpow.pop %v831
    %v833 = vmul.f32 %v803, 1.442695
    %v834 = vpow.pop %v833
    %v835 = vmul.f32 %v804, 1.442695
    %v836 = vpow.pop %v835
    %837 = vadd.xlane.f32.xlu0 %v806
    %v838 = vpop.xlane.xlu0 %837
    %839 = vadd.xlane.f32.xlu0 %v808
    %v840 = vpop.xlane.xlu0 %839
    %841 = vadd.xlane.f32.xlu0 %v810
    %v842 = vpop.xlane.xlu0 %841
    %843 = vadd.xlane.f32.xlu0 %v812
    %v844 = vpop.xlane.xlu0 %843
    %845 = vadd.xlane.f32.xlu0 %v814
    %v846 = vpop.xlane.xlu0 %845
    %847 = vadd.xlane.f32.xlu0 %v816
    %v848 = vpop.xlane.xlu0 %847
    %849 = vadd.xlane.f32.xlu0 %v818
    %v850 = vpop.xlane.xlu0 %849
    %851 = vadd.xlane.f32.xlu0 %v820
    %v852 = vpop.xlane.xlu0 %851
    %853 = vadd.xlane.f32.xlu0 %v822
    %v854 = vpop.xlane.xlu0 %853
    %855 = vadd.xlane.f32.xlu0 %v824
    %v856 = vpop.xlane.xlu0 %855
    %857 = vadd.xlane.f32.xlu0 %v826
    %v858 = vpop.xlane.xlu0 %857
    %859 = vadd.xlane.f32.xlu0 %v828
    %v860 = vpop.xlane.xlu0 %859
    %861 = vadd.xlane.f32.xlu0 %v830
    %v862 = vpop.xlane.xlu0 %861
    %863 = vadd.xlane.f32.xlu0 %v832
    %v864 = vpop.xlane.xlu0 %863
    %865 = vadd.xlane.f32.xlu0 %v834
    %v866 = vpop.xlane.xlu0 %865
    %867 = vadd.xlane.f32.xlu0 %v836
    %v868 = vpop.xlane.xlu0 %867
    %v869 = vlog2.pop %v838
    %v870 = vmul.f32 %v869, 0.6931472
    %v871 = vlog2.pop %v840
    %v872 = vmul.f32 %v871, 0.6931472
    %v873 = vlog2.pop %v842
    %v874 = vmul.f32 %v873, 0.6931472
    %v875 = vlog2.pop %v844
    %v876 = vmul.f32 %v875, 0.6931472
    %v877 = vlog2.pop %v846
    %v878 = vmul.f32 %v877, 0.6931472
    %v879 = vlog2.pop %v848
    %v880 = vmul.f32 %v879, 0.6931472
    %v881 = vlog2.pop %v850
    %v882 = vmul.f32 %v881, 0.6931472
    %v883 = vlog2.pop %v852
    %v884 = vmul.f32 %v883, 0.6931472
    %v885 = vlog2.pop %v854
    %v886 = vmul.f32 %v885, 0.6931472
    %v887 = vlog2.pop %v856
    %v888 = vmul.f32 %v887, 0.6931472
    %v889 = vlog2.pop %v858
    %v890 = vmul.f32 %v889, 0.6931472
    %v891 = vlog2.pop %v860
    %v892 = vmul.f32 %v891, 0.6931472
    %v893 = vlog2.pop %v862
    %v894 = vmul.f32 %v893, 0.6931472
    %v895 = vlog2.pop %v864
    %v896 = vmul.f32 %v895, 0.6931472
    %v897 = vlog2.pop %v866
    %v898 = vmul.f32 %v897, 0.6931472
    %v899 = vlog2.pop %v868
    %v900 = vmul.f32 %v899, 0.6931472
    %v901 = vsub.f32 %v789, %v870
    %v902 = vsub.f32 %v790, %v872
    %v903 = vsub.f32 %v791, %v874
    %v904 = vsub.f32 %v792, %v876
    %v905 = vsub.f32 %v793, %v878
    %v906 = vsub.f32 %v794, %v880
    %v907 = vsub.f32 %v795, %v882
    %v908 = vsub.f32 %v796, %v884
    %v909 = vsub.f32 %v797, %v886
    %v910 = vsub.f32 %v798, %v888
    %v911 = vsub.f32 %v799, %v890
    %v912 = vsub.f32 %v800, %v892
    %v913 = vsub.f32 %v801, %v894
    %v914 = vsub.f32 %v802, %v896
    %v915 = vsub.f32 %v803, %v898
    %v916 = vsub.f32 %v804, %v900
    %917 = vst [vmem:[%s6] sm:$0xff] %v901
    %918 = vst [vmem:[%s6 + $0x8] sm:$0xff] %v902
    %919 = vst [vmem:[%s6 + $0x10] sm:$0xff] %v903
    %920 = vst [vmem:[%s6 + $0x18] sm:$0xff] %v904
    %921 = vst [vmem:[%s6 + $0x20] sm:$0xff] %v905
    %922 = vst [vmem:[%s6 + $0x28] sm:$0xff] %v906
    %923 = vst [vmem:[%s6 + $0x30] sm:$0xff] %v907
    %924 = vst [vmem:[%s6 + $0x38] sm:$0xff] %v908
    %925 = vst [vmem:[%s6 + $0x40] sm:$0xff] %v909
    %926 = vst [vmem:[%s6 + $0x48] sm:$0xff] %v910
    %927 = vst [vmem:[%s6 + $0x50] sm:$0xff] %v911
    %928 = vst [vmem:[%s6 + $0x58] sm:$0xff] %v912
    %929 = vst [vmem:[%s6 + $0x60] sm:$0xff] %v913
    %930 = vst [vmem:[%s6 + $0x68] sm:$0xff] %v914
    %931 = vst [vmem:[%s6 + $0x70] sm:$0xff] %v915
    %932 = vst [vmem:[%s6 + $0x78] sm:$0xff] %v916
    // Predicated region
    $region30: #{gcn_net_forward.1} parent=1 // pred_check
      _
    $region31: #{gcn_net_forward.1} parent=1 // pred_check_branch
      %934 = sbr.rel (0) target = $region33
    $region32: #{gcn_net_forward.1} parent=1 // pred_region
      _
    $region33: #{gcn_net_forward.1} parent=1 // pred_fallthru
      _
    // Predicated region
    $region34: #{gcn_net_forward.1} parent=1 // pred_check
      _
    $region35: #{gcn_net_forward.1} parent=1 // pred_check_branch
      %936 = sbr.rel (0) target = $region37
    $region36: #{gcn_net_forward.1} parent=1 // pred_region
      _
    $region37: #{gcn_net_forward.1} parent=1 // pred_fallthru
      _
    %937 = vsyncpa [#allocation3], 1

</llo_original>
